<compile_context>
chip_gen: v5e
topology: v5e:2x2
jax: 0.10.0
libtpu: 0.0.40
codegen_flags: <defaults>
</compile_context>

<pallas_src>
import functools

import numpy as np

import jax
import jax.numpy as jnp
from jax.experimental import pallas as pl
from jax.experimental.pallas import tpu as pltpu


def _round_up(x, m):
    return ((x + m - 1) // m) * m


def _sublane(dtype):
    # Minimum sublane tile per dtype: f32 -> 8, bf16 -> 16, int8/fp8 -> 32.
    return max(8, 32 // jnp.dtype(dtype).itemsize)


# ---------------------------------------------------------------------------
# Fast path: contiguous positions (pos=None or pos==arange) -> copy + scale.
# ---------------------------------------------------------------------------
def _arange_kernel(emb_ref, out_ref, *, scale):
    # One tile-wide multiply + one unmasked full-tile store per grid step.
    out_ref[...] = (emb_ref[...] * scale).astype(out_ref.dtype)


def _arange_path(embedding, seq_len, scale):
    max_seq_len, dim = embedding.shape
    dtype = embedding.dtype
    itemsize = jnp.dtype(dtype).itemsize
    sub = _sublane(dtype)
    row_bytes = dim * itemsize

    # Large sublane-aligned tiles (~2-3 MiB) amortize the ~0.35 us/step grid
    # overhead and reach HBM roofline.  With double-buffered in+out that is
    # <= ~12 MiB, safely under v5e's 16 MiB scoped default and far under
    # v6e/v7x's 32 MiB scoped limits.
    target_block_bytes = 3 * 1024 * 1024
    rows_budget = max(sub, target_block_bytes // max(1, row_bytes))
    block_rows = min(rows_budget, _round_up(seq_len, sub), 4096)
    block_rows = max(sub, (block_rows // sub) * sub)
    block_bytes = block_rows * row_bytes
    grid = (pl.cdiv(seq_len, block_rows),)

    vmem_limit = int(min(32 * 1024 * 1024,
                         max(16 * 1024 * 1024, 5 * block_bytes)))

    # TODO(synk): if dim is not a multiple of 128, padding the table's last
    # dim to 128 in the caller would avoid masked (partial-lane) stores.
    return pl.pallas_call(
        functools.partial(_arange_kernel, scale=scale),
        out_shape=jax.ShapeDtypeStruct((seq_len, dim), dtype),
        grid_spec=pltpu.PrefetchScalarGridSpec(
            num_scalar_prefetch=0,
            grid=grid,
            # Stream only the needed rows of the table, tile by tile.
            in_specs=[pl.BlockSpec((block_rows, dim), lambda i: (i, 0))],
            out_specs=pl.BlockSpec((block_rows, dim), lambda i: (i, 0)),
        ),
        compiler_params=pltpu.CompilerParams(
            dimension_semantics=("parallel",),   # megacore-shardable on v7x
            vmem_limit_bytes=vmem_limit,
        ),
    )(embedding)


# ---------------------------------------------------------------------------
# General path: arbitrary positions -> double-buffered DMA row-gather from HBM.
# ---------------------------------------------------------------------------
def _gather_kernel(pos_ref, emb_hbm, out_ref, buf, sems, *,
                   scale, rows_per_block, max_seq_len, seq_len, num_blocks):
    # pos_ref : SMEM (padded_seq,) int32       -- scalar-prefetched positions
    # emb_hbm : HBM  (max_seq_len, dim)        -- table never resident in VMEM
    # out_ref : VMEM (rows_per_block, dim)     -- output tile
    # buf     : VMEM (2, rows_per_block, dim)  -- double-buffered gather scratch
    # sems    : DMA semaphores (2, rows_per_block)
    i = pl.program_id(0)
    slot = i & 1

    # Unroll indices below this bound are valid for every block; only the last
    # block's tail needs a dynamic guard (on both the DMA start and its wait,
    # with identical conditions, so no semaphore ever waits unsignaled).
    always_valid = seq_len - (num_blocks - 1) * rows_per_block

    def issue(block, dst_slot):
        base = block * rows_per_block
        for j in range(rows_per_block):
            row = base + j

            def _start(j=j, row=row, dst_slot=dst_slot):
                idx = jnp.clip(pos_ref[row], 0, max_seq_len - 1)  # OOB-safe
                pltpu.make_async_copy(emb_hbm.at[idx],
                                      buf.at[dst_slot, j],
                                      sems.at[dst_slot, j]).start()

            if j < always_valid:
                _start()                       # statically always in range
            else:
                pl.when(row < seq_len)(_start)  # guard padded tail rows

    # Prime the pipeline: first step issues its own block's DMAs.
    @pl.when(i == 0)
    def _():
        issue(i, slot)

    # Prefetch the NEXT block's rows into the other slot before waiting on the
    # current block -- hides the per-row DMA latency behind this step's work.
    @pl.when(i + 1 < num_blocks)
    def _():
        issue(i + 1, 1 - slot)

    # Wait for the current block's row DMAs (issued at the previous step, or
    # by the priming branch above when i == 0).
    base = i * rows_per_block
    for j in range(rows_per_block):
        row = base + j

        def _wait(j=j):
            pltpu.make_async_copy(emb_hbm.at[0], buf.at[slot, j],
                                  sems.at[slot, j]).wait()

        if j < always_valid:
            _wait()
        else:
            pl.when(row < seq_len)(_wait)

    # Single tile-wide scale + full-tile store.  Padded tail rows of the last
    # block hold stale scratch data, but Pallas masks the out-of-bounds rows
    # of the final output block on writeback, so they are never visible.
    out_ref[...] = (buf[slot] * scale).astype(out_ref.dtype)


def _gather_path(embedding, pos, seq_len, scale):
    max_seq_len, dim = embedding.shape
    dtype = embedding.dtype
    sub = _sublane(dtype)

    # Many rows per block: more in-flight row DMAs per step hides the issue /
    # latency cost of tiny row transfers and amortizes grid-step overhead.
    # VMEM cost is only 2*rows*dim*itemsize (e.g. 128 KiB at dim=128 f32).
    rows_per_block = max(sub, min(128, _round_up(seq_len, sub)))
    padded_seq = _round_up(seq_len, rows_per_block)
    num_blocks = padded_seq // rows_per_block

    pos = pos.astype(jnp.int32)
    # Pad only the tiny SMEM index vector; output stays (seq_len, dim) so no
    # post-kernel slice / extra HBM copy is needed.
    pos_padded = jnp.zeros((padded_seq,), jnp.int32).at[:seq_len].set(pos)

    return pl.pallas_call(
        functools.partial(_gather_kernel, scale=scale,
                          rows_per_block=rows_per_block,
                          max_seq_len=max_seq_len,
                          seq_len=seq_len,
                          num_blocks=num_blocks),
        out_shape=jax.ShapeDtypeStruct((seq_len, dim), dtype),
        grid_spec=pltpu.PrefetchScalarGridSpec(
            num_scalar_prefetch=1,                         # pos -> SMEM
            grid=(num_blocks,),
            in_specs=[pl.BlockSpec(memory_space=pl.ANY)],  # table stays in HBM
            out_specs=pl.BlockSpec((rows_per_block, dim),
                                   lambda i, pos_ref: (i, 0)),
            scratch_shapes=[
                pltpu.VMEM((2, rows_per_block, dim), dtype),
                pltpu.SemaphoreType.DMA((2, rows_per_block)),
            ],
        ),
        # Cross-grid-step DMA double-buffering carries state between steps, so
        # this axis must stay "arbitrary" (megacore "parallel" would break the
        # pipeline priming on the second TensorCore).
        compiler_params=pltpu.CompilerParams(
            dimension_semantics=("arbitrary",),
        ),
    )(pos_padded, embedding)


def absolute_positional_embedding(x, embedding, pos=None):
    """Returns embedding[pos] * dim**-0.5 (pos defaults to arange(x.shape[1]))."""
    max_seq_len, dim = embedding.shape
    scale = float(dim) ** (-0.5)

    if pos is None:
        seq_len = x.shape[1]
        if seq_len > max_seq_len:
            raise ValueError(f"seq_len={seq_len} exceeds max_seq_len={max_seq_len}")
        return _arange_path(embedding, seq_len, scale)

    pos = jnp.asarray(pos)
    out_len = int(pos.shape[0])

    # If pos is concrete and exactly arange(out_len), skip per-row gathers and
    # stream the first out_len rows instead (one big DMA per tile).
    pos_np = None
    try:
        pos_np = np.asarray(pos)
    except Exception:                 # traced under jit -> cannot inspect
        pos_np = None
    if (pos_np is not None and pos_np.ndim == 1 and out_len > 0
            and out_len <= max_seq_len
            and np.array_equal(pos_np, np.arange(out_len))):
        return _arange_path(embedding, out_len, scale)
    # TODO(synk): offset-contiguous pos (start + arange) could also be routed
    # to a streamed one-block-DMA-per-tile path instead of per-row gathers.

    return _gather_path(embedding, pos, out_len, scale)


if __name__ == "__main__":
    # Small, module-consistent shapes (seq_len deliberately not a multiple of 8
    # to exercise the masked boundary tile and the padded-tail DMA guards).
    batch, seq_len, dim, max_seq_len = 2, 12, 128, 64

    key = jax.random.PRNGKey(0)
    k_emb, k_x, k_pos, k_emb2, k_pos2 = jax.random.split(key, 5)

    # nn.Embedding default init: N(0, 1).
    embedding = jax.random.normal(k_emb, (max_seq_len, dim), dtype=jnp.float32)
    x = jax.random.normal(k_x, (batch, seq_len, dim), dtype=jnp.float32)
    scale = dim ** (-0.5)

    # Default path (pos=None): streamed copy+scale, no gather.
    out = jax.block_until_ready(absolute_positional_embedding(x, embedding))
    ref = embedding[:seq_len] * scale
    assert out.shape == (seq_len, dim), out.shape
    assert jnp.allclose(out, ref, atol=1e-6, rtol=1e-6), "arange path mismatch"

    # Explicit contiguous positions: detected and routed to the streamed path.
    pos_c = jnp.arange(seq_len, dtype=jnp.int32)
    out_c = jax.block_until_ready(absolute_positional_embedding(x, embedding, pos_c))
    assert jnp.allclose(out_c, ref, atol=1e-6, rtol=1e-6), "contiguous-pos mismatch"

    # Explicit arbitrary positions: single-block gather (tail rows guarded).
    pos = jax.random.permutation(k_pos, max_seq_len)[:seq_len].astype(jnp.int32)
    out_g = jax.block_until_ready(absolute_positional_embedding(x, embedding, pos))
    ref_g = embedding[pos] * scale
    assert out_g.shape == (seq_len, dim), out_g.shape
    assert jnp.allclose(out_g, ref_g, atol=1e-6, rtol=1e-6), "gather path mismatch"

    # Larger gather exercising the cross-step DMA double-buffer (2 blocks).
    max2, seq2 = 320, 200
    emb2 = jax.random.normal(k_emb2, (max2, dim), dtype=jnp.float32)
    x2 = jnp.zeros((1, seq2, dim), dtype=jnp.float32)
    pos2 = jax.random.permutation(k_pos2, max2)[:seq2].astype(jnp.int32)
    out2 = jax.block_until_ready(absolute_positional_embedding(x2, emb2, pos2))
    ref2 = emb2[pos2] * scale
    assert out2.shape == (seq2, dim), out2.shape
    assert jnp.allclose(out2, ref2, atol=1e-6, rtol=1e-6), "pipelined gather mismatch"

    print("KERNEL_OK")
</pallas_src>

<mosaic_0001>
module attributes {stable_mosaic.version = 11 : i64} {
  func.func @_arange_kernel(%arg0: i32, %arg1: memref<16x128xf32, #tpu.memory_space<vmem>>, %arg2: memref<16x128xf32, #tpu.memory_space<vmem>>) attributes {dimension_semantics = [#tpu.dimension_semantics<parallel>], iteration_bounds = array<i64: 1>, scalar_prefetch = 0 : i64, scratch_operands = 0 : i64, tpu.core_type = #tpu.core_type<tc>, window_params = [{transform_indices = @transform_0, window_bounds = array<i64: 16, 128>}, {transform_indices = @transform_1, window_bounds = array<i64: 16, 128>}]} {
    %c0 = arith.constant 0 : index
    %c0_0 = arith.constant 0 : index
    %0 = vector.load %arg1[%c0, %c0_0] : memref<16x128xf32, #tpu.memory_space<vmem>>, vector<16x128xf32>
    %cst = arith.constant 0.0883883461 : f32
    %1 = vector.broadcast %cst : f32 to vector<16x128xf32>
    %2 = arith.mulf %0, %1 : vector<16x128xf32>
    %c0_1 = arith.constant 0 : index
    %c0_2 = arith.constant 0 : index
    %3 = vector.load %arg2[%c0_1, %c0_2] : memref<16x128xf32, #tpu.memory_space<vmem>>, vector<16x128xf32>
    tpu.vector_store %arg2[%c0_1, %c0_2], %2 {strides = array<i32>} : memref<16x128xf32, #tpu.memory_space<vmem>>, vector<16x128xf32>,
    return
  }
  func.func @transform_0(%arg0: i32) -> (i32, i32) {
    %c0_i32 = arith.constant 0 : i32
    %c0_i32_0 = arith.constant 0 : i32
    return %arg0, %c0_i32 : i32, i32
  }
  func.func @transform_1(%arg0: i32) -> (i32, i32) {
    %c0_i32 = arith.constant 0 : i32
    %c0_i32_0 = arith.constant 0 : i32
    return %arg0, %c0_i32 : i32, i32
  }
}

</mosaic_0001>

<llo_original>
// kernel: tpu_custom_call.1
$region0: #{tpu_custom_call.1}
  #allocation0 [shape = 'u32[]', space=smem, size = 0x4, offset = 0x4, fixed_abs, tag = 'smem constant byte address 0x4 - core index']
  #allocation1 [shape = 'u32[72,128]{1,0:T(1,128)}', space=vmem, size = 0x9000, scoped, tag = 'internal scratch']
  %s0 = inlined_call_operand.hbm [shape: f32[64,128], index: 0, kind: input, shape index: {}]
  %s1 = inlined_call_operand.hbm [shape: f32[12,128], index: 1, kind: output, shape index: {}]
  %s2 = sld [smem:[#allocation0]]
  $region18: #{tpu_custom_call.1} parent=0
    _
  %s4 = ssub.s32 1, %s2
  %s5 = scalar_select 0, %s4, %s2
  $region1: #{tpu_custom_call.1} parent=0
    #allocation2 [shape = 'u8[8192]{0}', space=vmem, size = 0x2000, scoped, tag = 'input window, operand 0, single buffered']
    #allocation3 [shape = 's32[1]{0}', space=sflag, size = 0x4, scoped, tag = 'scoped memory for tpu_custom_call.1']
    #allocation4 [shape = 's32[1]{0}', space=sflag, size = 0x4, scoped, tag = 'scoped memory for tpu_custom_call.1']
    #allocation5 [shape = 'u8[8192]{0}', space=vmem, size = 0x2000, scoped, tag = 'output window, operand 0, single buffered']
    %6 = vsyncpa [#allocation3], 0
    %7 = vsyncpa [#allocation4], 0
    // Predicated region
    $region2: #{tpu_custom_call.1} parent=1 // pred_check
      _
    $region3: #{tpu_custom_call.1} parent=1 // pred_check_branch
      %9 = sbr.rel (0) target = $region5
    $region4: #{tpu_custom_call.1} parent=1 // pred_region
      %11 = vsyncadd [#allocation3], 0
      %s12 = sshll.u32 %s0, 4
      %s13 = int_to_ptr.hbm [resolvable:$true] %s12
      %s14 = sshll.u32 [#allocation2], 4
      %s15 = int_to_ptr.vmem [resolvable:$true] %s14
      %20 = dma.hbm_to_vmem [thread:$0]  %s13, 256, %s15, [#allocation3], 128, 128, 8
    $region5: #{tpu_custom_call.1} parent=1 // pred_fallthru
      _
    // Predicated region
    $region6: #{tpu_custom_call.1} parent=1 // pred_check
      _
    $region7: #{tpu_custom_call.1} parent=1 // pred_check_branch
      %22 = sbr.rel (0) target = $region9
    $region8: #{tpu_custom_call.1} parent=1 // pred_region
      %24 = dma.done [#allocation3], 256
    $region9: #{tpu_custom_call.1} parent=1 // pred_fallthru
      _
    %v25 = vld [vmem:[#allocation2] sm:$0xff]
    %v26 = vld [vmem:[#allocation2 + $0x8] sm:$0xff]
    %v27 = vmul.f32 %v25, 0.088388346
    %v28 = vmul.f32 %v26, 0.088388346
    %29 = vst [vmem:[#allocation5] sm:$0xff] %v27
    %30 = vst [vmem:[#allocation5 + $0x8] sm:$0xff] %v28
    // Predicated region
    $region10: #{tpu_custom_call.1} parent=1 // pred_check
      _
    $region11: #{tpu_custom_call.1} parent=1 // pred_check_branch
      %32 = sbr.rel (0) target = $region13
    $region12: #{tpu_custom_call.1} parent=1 // pred_region
      %34 = vsyncadd [#allocation4], 0
      %s35 = sshll.u32 [#allocation5], 4
      %s36 = int_to_ptr.vmem [resolvable:$true] %s35
      %s37 = sshll.u32 %s1, 4
      %s38 = int_to_ptr.hbm [resolvable:$true] %s37
      %43 = dma.vmem_to_hbm [thread:$0]  %s36, 256, %s38, [#allocation4], 128, 128, 8
    $region13: #{tpu_custom_call.1} parent=1 // pred_fallthru
      _
    // Predicated region
    $region14: #{tpu_custom_call.1} parent=1 // pred_check
      _
    $region15: #{tpu_custom_call.1} parent=1 // pred_check_branch
      %45 = sbr.rel (0) target = $region17
    $region16: #{tpu_custom_call.1} parent=1 // pred_region
      %47 = dma.done [#allocation4], 256
    $region17: #{tpu_custom_call.1} parent=1 // pred_fallthru
      _
    %48 = vsyncpa [#allocation3], 1
    %49 = vsyncpa [#allocation4], 1

</llo_original>
